<compile_context>
chip_gen: v6e
topology: v6e:2x2x1
jax: 0.10.0
libtpu: 0.0.40
codegen_flags: <defaults>
</compile_context>

<pallas_src>
import functools

import jax
import jax.numpy as jnp
from jax import lax
from jax.experimental import pallas as pl
from jax.experimental.pallas import tpu as pltpu


def _fcn_head_kernel(x_ref, w1_ref, b1_ref, mask_ref, w2_ref, b2_ref, o_ref,
                     *, taps, cmid_pad):
    # x_ref   : (1, Cin, H*W)          NCHW input, spatial flattened (lanes = H*W)
    # w1_ref  : (9*Cmid_pad, Cin)      BN-folded 3x3 taps stacked along M, k = dy*3+dx
    # b1_ref  : (Cmid_pad, 1)          BN-folded conv1 bias (zero in pad rows)
    # mask_ref: (9, 1, H*W)            per-tap border-validity mask
    # w2_ref  : (Cout, Cmid_pad)       1x1 conv weights (zero in pad cols)
    # b2_ref  : (Cout, 1)
    # o_ref   : (1, Cout, H*W)         flattened-NCHW output (lane-dense store)
    xf = x_ref[0]                                               # (Cin, H*W)

    # --- Conv2d 3x3, pad=1: all 9 taps in ONE MXU matmul (M = 9*Cmid_pad) ---
    parts = jnp.dot(w1_ref[...], xf,
                    preferred_element_type=jnp.float32)         # (9*Cmid_pad, H*W)

    # Center tap (dy=1, dx=1): zero shift, all-ones mask.
    acc = parts[4 * cmid_pad:5 * cmid_pad, :]                   # (Cmid_pad, H*W)
    # Remaining 8 taps: shift the partial on the XLU, mask borders on the VPU.
    for k, shift in taps:                                       # static unroll
        p = parts[k * cmid_pad:(k + 1) * cmid_pad, :]           # sublane-aligned slice
        acc = acc + mask_ref[k] * pltpu.roll(p, shift=shift, axis=1)

    # --- (BN folded into conv1) bias + ReLU; Dropout(eval) == identity ---
    # TODO(synk): training-mode dropout mask (pltpu.prng_*) not implemented.
    y = jnp.maximum(acc + b1_ref[...], 0.0)                     # (Cmid_pad, H*W)

    # --- Conv2d 1x1: (Cout, Cmid_pad) @ (Cmid_pad, H*W) -> lane-dense output ---
    out = jnp.dot(w2_ref[...], y, preferred_element_type=jnp.float32)
    o_ref[0] = (out + b2_ref[...]).astype(o_ref.dtype)


def fcn_head_forward(x_nchw, params, *, eps=1e-5):
    """x_nchw: (N, Cin, H, W) float32. Returns (N, Cout, H, W) float32."""
    w1, b1, gamma, beta, mean, var, w2, b2 = params
    N, Cin, H, W = x_nchw.shape
    Cmid = w1.shape[0]
    Cout = w2.shape[0]
    HW = H * W
    Cmid_pad = -(-Cmid // 8) * 8                                 # sublane-aligned

    # ---- host-side parameter prep (one-time, tiny) ----
    # Fold BatchNorm (eval) into conv1: w1' = w1*scale, b1' = (b1-mean)*scale+beta
    scale = gamma * lax.rsqrt(var + eps)                         # (Cmid,)
    w1_f = (w1 * scale[:, None, None, None]).astype(jnp.float32)
    b1_f = ((b1 - mean) * scale + beta).astype(jnp.float32)

    # (Cmid, Cin, 3, 3) -> (9, Cmid, Cin), k = dy*3 + dx; pad Cmid -> Cmid_pad,
    # then stack taps along M so conv1 is a single matmul.
    w1_taps = jnp.transpose(w1_f, (2, 3, 0, 1)).reshape(9, Cmid, Cin)
    w1_stacked = jnp.zeros((9, Cmid_pad, Cin), jnp.float32)
    w1_stacked = w1_stacked.at[:, :Cmid, :].set(w1_taps).reshape(9 * Cmid_pad, Cin)

    b1_pad = jnp.zeros((Cmid_pad, 1), jnp.float32).at[:Cmid, 0].set(b1_f)
    w2_mat = jnp.zeros((Cout, Cmid_pad), jnp.float32)
    w2_mat = w2_mat.at[:, :Cmid].set(w2[:, :, 0, 0].astype(jnp.float32))

    # Per-tap border masks (output-position indexed) + roll shifts.
    hh = jnp.arange(H).reshape(H, 1)
    ww = jnp.arange(W).reshape(1, W)
    masks, taps = [], []
    for dy in range(3):
        for dx in range(3):
            k = dy * 3 + dx
            valid = ((hh + dy - 1 >= 0) & (hh + dy - 1 < H) &
                     (ww + dx - 1 >= 0) & (ww + dx - 1 < W))
            masks.append(valid.astype(jnp.float32).reshape(1, HW))
            if k != 4:  # center tap needs neither roll nor mask
                taps.append((k, ((1 - dy) * W + (1 - dx)) % HW))
    masks = jnp.stack(masks, axis=0)                             # (9, 1, HW)

    # NCHW -> (N, Cin, H*W): contiguous reshape — no transpose / pad in HBM.
    x_flat = x_nchw.reshape(N, Cin, HW)

    # VMEM budget: double-buffered x/out tiles + resident params/masks +
    # in-kernel f32 intermediates (stacked matmul result dominates).
    est = 4 * (2 * Cin * HW                  # x tile (double-buffered)
               + 9 * Cmid_pad * Cin          # stacked w1 (resident)
               + 9 * HW                      # masks (resident)
               + 2 * Cout * HW               # output tile (double-buffered)
               + 9 * Cmid_pad * HW           # stacked matmul result
               + 3 * Cmid_pad * HW           # acc + rolled temp + relu result
               + Cout * HW
               + 2 * (Cmid_pad + Cout + Cout * Cmid_pad))
    vmem_limit = int(min(max(2 * est, 32 * 2**20), 64 * 2**20))

    kernel = functools.partial(_fcn_head_kernel, taps=tuple(taps),
                               cmid_pad=Cmid_pad)

    # TODO(synk): for AGPCNet-scale inputs (Cin~256, H=W>=128) add a halo'd
    # row-tile grid axis (manual DMA double-buffering) so tiles fit v7x's
    # 64 MiB VMEM and both v7x TensorCores engage even when N == 1.
    out_flat = pl.pallas_call(
        kernel,
        out_shape=jax.ShapeDtypeStruct((N, Cout, HW), jnp.float32),
        grid_spec=pltpu.PrefetchScalarGridSpec(
            num_scalar_prefetch=0,
            grid=(N,),
            in_specs=[
                pl.BlockSpec((1, Cin, HW), lambda n: (n, 0, 0)),       # x
                pl.BlockSpec((9 * Cmid_pad, Cin), lambda n: (0, 0)),   # w1 stacked
                pl.BlockSpec((Cmid_pad, 1), lambda n: (0, 0)),         # b1 (folded)
                pl.BlockSpec((9, 1, HW), lambda n: (0, 0, 0)),         # masks
                pl.BlockSpec((Cout, Cmid_pad), lambda n: (0, 0)),      # w2
                pl.BlockSpec((Cout, 1), lambda n: (0, 0)),             # b2
            ],
            out_specs=pl.BlockSpec((1, Cout, HW), lambda n: (n, 0, 0)),
        ),
        compiler_params=pltpu.CompilerParams(
            dimension_semantics=("parallel",),
            vmem_limit_bytes=vmem_limit,
        ),
    )(x_flat, w1_stacked, b1_pad, masks, w2_mat,
      b2.astype(jnp.float32).reshape(Cout, 1))

    # Flattened NCHW -> NCHW (free reshape, no transpose).
    return out_flat.reshape(N, Cout, H, W)


def _reference_forward(x_nchw, params, *, eps=1e-5):
    """Pure-JAX reference (lax.conv) for a correctness check."""
    w1, b1, gamma, beta, mean, var, w2, b2 = params
    y = lax.conv_general_dilated(
        x_nchw, w1, window_strides=(1, 1), padding=((1, 1), (1, 1)),
        dimension_numbers=("NCHW", "OIHW", "NCHW"))
    y = y + b1[None, :, None, None]
    y = (y - mean[None, :, None, None]) * lax.rsqrt(var + eps)[None, :, None, None]
    y = y * gamma[None, :, None, None] + beta[None, :, None, None]
    y = jnp.maximum(y, 0.0)
    y = lax.conv_general_dilated(
        y, w2, window_strides=(1, 1), padding=((0, 0), (0, 0)),
        dimension_numbers=("NCHW", "OIHW", "NCHW"))
    return y + b2[None, :, None, None]


if __name__ == "__main__":
    # Small shapes: N=2, Cin=16 -> inter=4, Cout=2, H=W=16
    N, Cin, H, W = 2, 16, 16, 16
    Cmid, Cout = Cin // 4, 2

    key = jax.random.PRNGKey(0)
    ks = jax.random.split(key, 8)
    x = jax.random.normal(ks[0], (N, Cin, H, W), jnp.float32)

    w1 = 0.1 * jax.random.normal(ks[1], (Cmid, Cin, 3, 3), jnp.float32)
    b1 = 0.05 * jax.random.normal(ks[2], (Cmid,), jnp.float32)
    gamma = 1.0 + 0.1 * jax.random.normal(ks[3], (Cmid,), jnp.float32)
    beta = 0.1 * jax.random.normal(ks[4], (Cmid,), jnp.float32)
    mean = 0.1 * jax.random.normal(ks[5], (Cmid,), jnp.float32)
    var = jnp.abs(jax.random.normal(ks[6], (Cmid,), jnp.float32)) + 0.5
    w2 = 0.1 * jax.random.normal(ks[7], (Cout, Cmid, 1, 1), jnp.float32)
    b2 = jnp.linspace(-0.1, 0.1, Cout).astype(jnp.float32)

    params = (w1, b1, gamma, beta, mean, var, w2, b2)

    out = fcn_head_forward(x, params)
    out = jax.block_until_ready(out)

    ref = _reference_forward(x, params)
    assert out.shape == (N, Cout, H, W)
    assert jnp.allclose(out, ref, atol=2e-4, rtol=2e-4), (
        float(jnp.max(jnp.abs(out - ref))))

    print("KERNEL_OK")
</pallas_src>

<mosaic_0001>
module attributes {stable_mosaic.version = 11 : i64} {
  func.func @_fcn_head_kernel(%arg0: i32, %arg1: memref<1x16x256xf32, #tpu.memory_space<vmem>>, %arg2: memref<72x16xf32, #tpu.memory_space<vmem>>, %arg3: memref<8x1xf32, #tpu.memory_space<vmem>>, %arg4: memref<9x1x256xf32, #tpu.memory_space<vmem>>, %arg5: memref<2x8xf32, #tpu.memory_space<vmem>>, %arg6: memref<2x1xf32, #tpu.memory_space<vmem>>, %arg7: memref<1x2x256xf32, #tpu.memory_space<vmem>>) attributes {dimension_semantics = [#tpu.dimension_semantics<parallel>], iteration_bounds = array<i64: 2>, scalar_prefetch = 0 : i64, scratch_operands = 0 : i64, tpu.core_type = #tpu.core_type<tc>, window_params = [{transform_indices = @transform_0, window_bounds = array<i64: 1, 16, 256>}, {pipeline_mode = #tpu.pipeline_mode<synchronous>, transform_indices = @transform_1, window_bounds = array<i64: 72, 16>}, {pipeline_mode = #tpu.pipeline_mode<synchronous>, transform_indices = @transform_2, window_bounds = array<i64: 8, 1>}, {pipeline_mode = #tpu.pipeline_mode<synchronous>, transform_indices = @transform_3, window_bounds = array<i64: 9, 1, 256>}, {pipeline_mode = #tpu.pipeline_mode<synchronous>, transform_indices = @transform_4, window_bounds = array<i64: 2, 8>}, {pipeline_mode = #tpu.pipeline_mode<synchronous>, transform_indices = @transform_5, window_bounds = array<i64: 2, 1>}, {transform_indices = @transform_6, window_bounds = array<i64: 1, 2, 256>}]} {
    %c0 = arith.constant 0 : index
    %c0_0 = arith.constant 0 : index
    %c0_1 = arith.constant 0 : index
    %0 = vector.load %arg1[%c0, %c0_0, %c0_1] : memref<1x16x256xf32, #tpu.memory_space<vmem>>, vector<1x16x256xf32>
    %1 = vector.shape_cast %0 : vector<1x16x256xf32> to vector<16x256xf32>
    %c0_2 = arith.constant 0 : index
    %c0_3 = arith.constant 0 : index
    %2 = vector.load %arg2[%c0_2, %c0_3] : memref<72x16xf32, #tpu.memory_space<vmem>>, vector<72x16xf32>
    %cst = arith.constant dense<0.000000e+00> : vector<72x256xf32>
    %3 = tpu.matmul %2, %1, %cst {dimension_numbers = #tpu.dot_dimension_numbers<[1], [0], [0], [1], [0, 0, 1, 1], [], []>} : vector<72x16xf32>, vector<16x256xf32>, vector<72x256xf32> -> vector<72x256xf32>
    %4 = vector.extract_strided_slice %3 {offsets = [32, 0], sizes = [8, 256], strides = [1, 1]} : vector<72x256xf32> to vector<8x256xf32>
    %5 = vector.extract_strided_slice %3 {offsets = [0, 0], sizes = [8, 256], strides = [1, 1]} : vector<72x256xf32> to vector<8x256xf32>
    %c0_4 = arith.constant 0 : index
    %c0_5 = arith.constant 0 : index
    %c0_6 = arith.constant 0 : index
    %6 = vector.load %arg4[%c0_4, %c0_5, %c0_6] : memref<9x1x256xf32, #tpu.memory_space<vmem>>, vector<1x1x256xf32>
    %7 = vector.shape_cast %6 : vector<1x1x256xf32> to vector<1x256xf32>
    %c17_i32 = arith.constant 17 : i32
    %8 = tpu.dynamic_rotate %5 by %c17_i32 dim 1 : vector<8x256xf32>, i32 -> vector<8x256xf32>
    %9 = vector.broadcast %7 : vector<1x256xf32> to vector<8x256xf32>
    %10 = arith.mulf %9, %8 : vector<8x256xf32>
    %11 = arith.addf %4, %10 : vector<8x256xf32>
    %12 = vector.extract_strided_slice %3 {offsets = [8, 0], sizes = [8, 256], strides = [1, 1]} : vector<72x256xf32> to vector<8x256xf32>
    %c1 = arith.constant 1 : index
    %c0_7 = arith.constant 0 : index
    %c0_8 = arith.constant 0 : index
    %13 = vector.load %arg4[%c1, %c0_7, %c0_8] : memref<9x1x256xf32, #tpu.memory_space<vmem>>, vector<1x1x256xf32>
    %14 = vector.shape_cast %13 : vector<1x1x256xf32> to vector<1x256xf32>
    %c16_i32 = arith.constant 16 : i32
    %15 = tpu.dynamic_rotate %12 by %c16_i32 dim 1 : vector<8x256xf32>, i32 -> vector<8x256xf32>
    %16 = vector.broadcast %14 : vector<1x256xf32> to vector<8x256xf32>
    %17 = arith.mulf %16, %15 : vector<8x256xf32>
    %18 = arith.addf %11, %17 : vector<8x256xf32>
    %19 = vector.extract_strided_slice %3 {offsets = [16, 0], sizes = [8, 256], strides = [1, 1]} : vector<72x256xf32> to vector<8x256xf32>
    %c2 = arith.constant 2 : index
    %c0_9 = arith.constant 0 : index
    %c0_10 = arith.constant 0 : index
    %20 = vector.load %arg4[%c2, %c0_9, %c0_10] : memref<9x1x256xf32, #tpu.memory_space<vmem>>, vector<1x1x256xf32>
    %21 = vector.shape_cast %20 : vector<1x1x256xf32> to vector<1x256xf32>
    %c15_i32 = arith.constant 15 : i32
    %22 = tpu.dynamic_rotate %19 by %c15_i32 dim 1 : vector<8x256xf32>, i32 -> vector<8x256xf32>
    %23 = vector.broadcast %21 : vector<1x256xf32> to vector<8x256xf32>
    %24 = arith.mulf %23, %22 : vector<8x256xf32>
    %25 = arith.addf %18, %24 : vector<8x256xf32>
    %26 = vector.extract_strided_slice %3 {offsets = [24, 0], sizes = [8, 256], strides = [1, 1]} : vector<72x256xf32> to vector<8x256xf32>
    %c3 = arith.constant 3 : index
    %c0_11 = arith.constant 0 : index
    %c0_12 = arith.constant 0 : index
    %27 = vector.load %arg4[%c3, %c0_11, %c0_12] : memref<9x1x256xf32, #tpu.memory_space<vmem>>, vector<1x1x256xf32>
    %28 = vector.shape_cast %27 : vector<1x1x256xf32> to vector<1x256xf32>
    %c1_i32 = arith.constant 1 : i32
    %29 = tpu.dynamic_rotate %26 by %c1_i32 dim 1 : vector<8x256xf32>, i32 -> vector<8x256xf32>
    %30 = vector.broadcast %28 : vector<1x256xf32> to vector<8x256xf32>
    %31 = arith.mulf %30, %29 : vector<8x256xf32>
    %32 = arith.addf %25, %31 : vector<8x256xf32>
    %33 = vector.extract_strided_slice %3 {offsets = [40, 0], sizes = [8, 256], strides = [1, 1]} : vector<72x256xf32> to vector<8x256xf32>
    %c5 = arith.constant 5 : index
    %c0_13 = arith.constant 0 : index
    %c0_14 = arith.constant 0 : index
    %34 = vector.load %arg4[%c5, %c0_13, %c0_14] : memref<9x1x256xf32, #tpu.memory_space<vmem>>, vector<1x1x256xf32>
    %35 = vector.shape_cast %34 : vector<1x1x256xf32> to vector<1x256xf32>
    %c255_i32 = arith.constant 255 : i32
    %36 = tpu.dynamic_rotate %33 by %c255_i32 dim 1 : vector<8x256xf32>, i32 -> vector<8x256xf32>
    %37 = vector.broadcast %35 : vector<1x256xf32> to vector<8x256xf32>
    %38 = arith.mulf %37, %36 : vector<8x256xf32>
    %39 = arith.addf %32, %38 : vector<8x256xf32>
    %40 = vector.extract_strided_slice %3 {offsets = [48, 0], sizes = [8, 256], strides = [1, 1]} : vector<72x256xf32> to vector<8x256xf32>
    %c6 = arith.constant 6 : index
    %c0_15 = arith.constant 0 : index
    %c0_16 = arith.constant 0 : index
    %41 = vector.load %arg4[%c6, %c0_15, %c0_16] : memref<9x1x256xf32, #tpu.memory_space<vmem>>, vector<1x1x256xf32>
    %42 = vector.shape_cast %41 : vector<1x1x256xf32> to vector<1x256xf32>
    %c241_i32 = arith.constant 241 : i32
    %43 = tpu.dynamic_rotate %40 by %c241_i32 dim 1 : vector<8x256xf32>, i32 -> vector<8x256xf32>
    %44 = vector.broadcast %42 : vector<1x256xf32> to vector<8x256xf32>
    %45 = arith.mulf %44, %43 : vector<8x256xf32>
    %46 = arith.addf %39, %45 : vector<8x256xf32>
    %47 = vector.extract_strided_slice %3 {offsets = [56, 0], sizes = [8, 256], strides = [1, 1]} : vector<72x256xf32> to vector<8x256xf32>
    %c7 = arith.constant 7 : index
    %c0_17 = arith.constant 0 : index
    %c0_18 = arith.constant 0 : index
    %48 = vector.load %arg4[%c7, %c0_17, %c0_18] : memref<9x1x256xf32, #tpu.memory_space<vmem>>, vector<1x1x256xf32>
    %49 = vector.shape_cast %48 : vector<1x1x256xf32> to vector<1x256xf32>
    %c240_i32 = arith.constant 240 : i32
    %50 = tpu.dynamic_rotate %47 by %c240_i32 dim 1 : vector<8x256xf32>, i32 -> vector<8x256xf32>
    %51 = vector.broadcast %49 : vector<1x256xf32> to vector<8x256xf32>
    %52 = arith.mulf %51, %50 : vector<8x256xf32>
    %53 = arith.addf %46, %52 : vector<8x256xf32>
    %54 = vector.extract_strided_slice %3 {offsets = [64, 0], sizes = [8, 256], strides = [1, 1]} : vector<72x256xf32> to vector<8x256xf32>
    %c8 = arith.constant 8 : index
    %c0_19 = arith.constant 0 : index
    %c0_20 = arith.constant 0 : index
    %55 = vector.load %arg4[%c8, %c0_19, %c0_20] : memref<9x1x256xf32, #tpu.memory_space<vmem>>, vector<1x1x256xf32>
    %56 = vector.shape_cast %55 : vector<1x1x256xf32> to vector<1x256xf32>
    %c239_i32 = arith.constant 239 : i32
    %57 = tpu.dynamic_rotate %54 by %c239_i32 dim 1 : vector<8x256xf32>, i32 -> vector<8x256xf32>
    %58 = vector.broadcast %56 : vector<1x256xf32> to vector<8x256xf32>
    %59 = arith.mulf %58, %57 : vector<8x256xf32>
    %60 = arith.addf %53, %59 : vector<8x256xf32>
    %c0_21 = arith.constant 0 : index
    %c0_22 = arith.constant 0 : index
    %61 = vector.load %arg3[%c0_21, %c0_22] : memref<8x1xf32, #tpu.memory_space<vmem>>, vector<8x1xf32>
    %62 = vector.broadcast %61 : vector<8x1xf32> to vector<8x256xf32>
    %63 = arith.addf %60, %62 : vector<8x256xf32>
    %cst_23 = arith.constant 0.000000e+00 : f32
    %64 = vector.broadcast %cst_23 : f32 to vector<8x256xf32>
    %65 = arith.maximumf %63, %64 : vector<8x256xf32>
    %c0_24 = arith.constant 0 : index
    %c0_25 = arith.constant 0 : index
    %66 = vector.load %arg5[%c0_24, %c0_25] : memref<2x8xf32, #tpu.memory_space<vmem>>, vector<2x8xf32>
    %cst_26 = arith.constant dense<0.000000e+00> : vector<2x256xf32>
    %67 = tpu.matmul %66, %65, %cst_26 {dimension_numbers = #tpu.dot_dimension_numbers<[1], [0], [0], [1], [0, 0, 1, 1], [], []>} : vector<2x8xf32>, vector<8x256xf32>, vector<2x256xf32> -> vector<2x256xf32>
    %c0_27 = arith.constant 0 : index
    %c0_28 = arith.constant 0 : index
    %68 = vector.load %arg6[%c0_27, %c0_28] : memref<2x1xf32, #tpu.memory_space<vmem>>, vector<2x1xf32>
    %69 = vector.broadcast %68 : vector<2x1xf32> to vector<2x256xf32>
    %70 = arith.addf %67, %69 : vector<2x256xf32>
    %c0_29 = arith.constant 0 : index
    %c0_30 = arith.constant 0 : index
    %c0_31 = arith.constant 0 : index
    %71 = vector.load %arg7[%c0_29, %c0_30, %c0_31] : memref<1x2x256xf32, #tpu.memory_space<vmem>>, vector<1x2x256xf32>
    %72 = vector.shape_cast %71 : vector<1x2x256xf32> to vector<2x256xf32>
    %73 = vector.shape_cast %70 : vector<2x256xf32> to vector<1x2x256xf32>
    tpu.vector_store %arg7[%c0_29, %c0_30, %c0_31], %73 {strides = array<i32>} : memref<1x2x256xf32, #tpu.memory_space<vmem>>, vector<1x2x256xf32>,
    return
  }
  func.func @transform_0(%arg0: i32) -> (i32, i32, i32) {
    %c0_i32 = arith.constant 0 : i32
    %c0_i32_0 = arith.constant 0 : i32
    %c0_i32_1 = arith.constant 0 : i32
    return %arg0, %c0_i32, %c0_i32_0 : i32, i32, i32
  }
  func.func @transform_1(%arg0: i32) -> (i32, i32) {
    %c0_i32 = arith.constant 0 : i32
    %c0_i32_0 = arith.constant 0 : i32
    %c0_i32_1 = arith.constant 0 : i32
    return %c0_i32, %c0_i32_0 : i32, i32
  }
  func.func @transform_2(%arg0: i32) -> (i32, i32) {
    %c0_i32 = arith.constant 0 : i32
    %c0_i32_0 = arith.constant 0 : i32
    %c0_i32_1 = arith.constant 0 : i32
    return %c0_i32, %c0_i32_0 : i32, i32
  }
  func.func @transform_3(%arg0: i32) -> (i32, i32, i32) {
    %c0_i32 = arith.constant 0 : i32
    %c0_i32_0 = arith.constant 0 : i32
    %c0_i32_1 = arith.constant 0 : i32
    %c0_i32_2 = arith.constant 0 : i32
    return %c0_i32, %c0_i32_0, %c0_i32_1 : i32, i32, i32
  }
  func.func @transform_4(%arg0: i32) -> (i32, i32) {
    %c0_i32 = arith.constant 0 : i32
    %c0_i32_0 = arith.constant 0 : i32
    %c0_i32_1 = arith.constant 0 : i32
    return %c0_i32, %c0_i32_0 : i32, i32
  }
  func.func @transform_5(%arg0: i32) -> (i32, i32) {
    %c0_i32 = arith.constant 0 : i32
    %c0_i32_0 = arith.constant 0 : i32
    %c0_i32_1 = arith.constant 0 : i32
    return %c0_i32, %c0_i32_0 : i32, i32
  }
  func.func @transform_6(%arg0: i32) -> (i32, i32, i32) {
    %c0_i32 = arith.constant 0 : i32
    %c0_i32_0 = arith.constant 0 : i32
    %c0_i32_1 = arith.constant 0 : i32
    return %arg0, %c0_i32, %c0_i32_0 : i32, i32, i32
  }
}

</mosaic_0001>

<llo_original>
// kernel: tpu_custom_call.1
$region0: #{tpu_custom_call.1}
  #allocation0 [shape = 'u32[]', space=smem, size = 0x4, offset = 0x4, fixed_abs, tag = 'smem constant byte address 0x4 - core index']
  #allocation1 [shape = 'u32[144,128]{1,0:T(1,128)}', space=vmem, size = 0x12000, scoped, tag = 'internal scratch']
  %s0 = inlined_call_operand.vmem [shape: f32[2,16,256], index: 0, kind: input, shape index: {}]
  %s1 = inlined_call_operand.vmem [shape: f32[72,16], index: 1, kind: input, shape index: {}]
  %s2 = inlined_call_operand.vmem [shape: f32[8,1], index: 2, kind: input, shape index: {}]
  %s3 = inlined_call_operand.vmem [shape: f32[9,1,256], index: 3, kind: input, shape index: {}]
  %s4 = inlined_call_operand.vmem [shape: f32[2,8], index: 4, kind: input, shape index: {}]
  %s5 = inlined_call_operand.vmem [shape: f32[2,1], index: 5, kind: input, shape index: {}]
  %s6 = inlined_call_operand.hbm [shape: f32[2,2,256], index: 6, kind: output, shape index: {}]
  %s7 = sld [smem:[#allocation0]]
  $region57: #{tpu_custom_call.1} parent=0
    _
  %s9 = ssub.s32 1, %s7
  %s10 = scalar_select 0, %s9, %s7
  $region1: #{tpu_custom_call.1} parent=0
    #allocation2 [shape = 'u8[4096]{0}', space=vmem, size = 0x1000, scoped, tag = 'output window, operand 0']
    #allocation3 [shape = 's32[2]{0}', space=sflag, size = 0x8, scoped, tag = 'scoped memory for tpu_custom_call.1']
    %11 = vsyncpa [#allocation3], 0
    %s12 = scalar_lea.sflag [#allocation3], 1
    %13 = vsyncpa %s12, 0
    loop: start=0, step=1, limit=4
    $region2: #{tpu_custom_call.1} parent=1 // loop_pre_header
      _
    $region3: #{tpu_custom_call.1} parent=1 // loop_header
      %s15 = sphi 0, %s19
      %p16 = scmp.ge.s32.totalorder %s15, 4
      %s25 = sphi 0, %s27
      %s28 = sphi 0, %s25
      %s29 = sphi 0, %s28
      %s45 = sphi 0, %s29
      %s49 = sphi 0, %s49
      %s51 = sphi 0, %s49
      %s52 = sphi 0, %s51
      %s66 = sphi 0, %s52
      %s70 = sphi 0, %s70
      %s72 = sphi 0, %s70
      %s73 = sphi 0, %s72
      %s87 = sphi 0, %s73
      %s91 = sphi 0, %s91
      %s93 = sphi 0, %s91
      %s94 = sphi 0, %s93
      %s108 = sphi 0, %s94
      %s112 = sphi 0, %s112
      %s114 = sphi 0, %s112
      %s115 = sphi 0, %s114
      %s129 = sphi 0, %s115
      %s133 = sphi 0, %s133
      %s135 = sphi 0, %s133
      %s136 = sphi 0, %s135
      %s150 = sphi 0, %s136
      %s156 = sphi 0, %s158
      %s159 = sphi 0, %s156
      %s160 = sphi 0, %s159
      %s176 = sphi 0, %s160
    $region4: #{tpu_custom_call.1} parent=1 // loop_header_branch
      %18 = sbr.rel (%p16) target = $region8
    $region5: #{tpu_custom_call.1} parent=1 // loop_body
      %s20 = ssub.s32 %s15, 1
      %s21 = ssub.s32 %s15, 2
      %s22 = sadd.s32 %s15, 1
      %s23 = ssub.s32 %s15, %s22
      %p24 = scmp.eq.s32.totalorder %s23, 0
      %s26 = sadd.s32 %s25, 1
      %s27 = scalar_select %p24, %s25, %s26
      %p30 = pneg %p24
      %p31 = scmp.eq.s32.totalorder %s15, 1
      %p32 = por %p30, %p31
      %p33 = scmp.ne.s32.totalorder %s25, %s28
      %p34 = scmp.eq.s32.totalorder %s15, 0
      %p35 = por %p33, %p34
      %p36 = scmp.ne.s32.totalorder %s25, %s28
      %p37 = scmp.eq.s32.totalorder %s20, 1
      %p38 = por %p36, %p37
      %p39 = scmp.ne.s32.totalorder %s28, %s29
      %p40 = scmp.eq.s32.totalorder %s20, 0
      %p41 = por %p39, %p40
      %p42 = scmp.ne.s32.totalorder %s28, %s29
      %p43 = scmp.eq.s32.totalorder %s21, 1
      %p44 = por %p42, %p43
      %p46 = scmp.ne.s32.totalorder %s29, %s45
      %p47 = scmp.eq.s32.totalorder %s21, 0
      %p48 = por %p46, %p47
      %s50 = sadd.s32 %s49, 1
      %p53 = scmp.eq.s32.totalorder %s15, 1
      %p54 = scmp.ne.s32.totalorder %s49, %s51
      %p55 = scmp.eq.s32.totalorder %s15, 0
      %p56 = por %p54, %p55
      %p57 = scmp.ne.s32.totalorder %s49, %s51
      %p58 = scmp.eq.s32.totalorder %s20, 1
      %p59 = por %p57, %p58
      %p60 = scmp.ne.s32.totalorder %s51, %s52
      %p61 = scmp.eq.s32.totalorder %s20, 0
      %p62 = por %p60, %p61
      %p63 = scmp.ne.s32.totalorder %s51, %s52
      %p64 = scmp.eq.s32.totalorder %s21, 1
      %p65 = por %p63, %p64
      %p67 = scmp.ne.s32.totalorder %s52, %s66
      %p68 = scmp.eq.s32.totalorder %s21, 0
      %p69 = por %p67, %p68
      %s71 = sadd.s32 %s70, 1
      %p74 = scmp.eq.s32.totalorder %s15, 1
      %p75 = scmp.ne.s32.totalorder %s70, %s72
      %p76 = scmp.eq.s32.totalorder %s15, 0
      %p77 = por %p75, %p76
      %p78 = scmp.ne.s32.totalorder %s70, %s72
      %p79 = scmp.eq.s32.totalorder %s20, 1
      %p80 = por %p78, %p79
      %p81 = scmp.ne.s32.totalorder %s72, %s73
      %p82 = scmp.eq.s32.totalorder %s20, 0
      %p83 = por %p81, %p82
      %p84 = scmp.ne.s32.totalorder %s72, %s73
      %p85 = scmp.eq.s32.totalorder %s21, 1
      %p86 = por %p84, %p85
      %p88 = scmp.ne.s32.totalorder %s73, %s87
      %p89 = scmp.eq.s32.totalorder %s21, 0
      %p90 = por %p88, %p89
      %s92 = sadd.s32 %s91, 1
      %p95 = scmp.eq.s32.totalorder %s15, 1
      %p96 = scmp.ne.s32.totalorder %s91, %s93
      %p97 = scmp.eq.s32.totalorder %s15, 0
      %p98 = por %p96, %p97
      %p99 = scmp.ne.s32.totalorder %s91, %s93
      %p100 = scmp.eq.s32.totalorder %s20, 1
      %p101 = por %p99, %p100
      %p102 = scmp.ne.s32.totalorder %s93, %s94
      %p103 = scmp.eq.s32.totalorder %s20, 0
      %p104 = por %p102, %p103
      %p105 = scmp.ne.s32.totalorder %s93, %s94
      %p106 = scmp.eq.s32.totalorder %s21, 1
      %p107 = por %p105, %p106
      %p109 = scmp.ne.s32.totalorder %s94, %s108
      %p110 = scmp.eq.s32.totalorder %s21, 0
      %p111 = por %p109, %p110
      %s113 = sadd.s32 %s112, 1
      %p116 = scmp.eq.s32.totalorder %s15, 1
      %p117 = scmp.ne.s32.totalorder %s112, %s114
      %p118 = scmp.eq.s32.totalorder %s15, 0
      %p119 = por %p117, %p118
      %p120 = scmp.ne.s32.totalorder %s112, %s114
      %p121 = scmp.eq.s32.totalorder %s20, 1
      %p122 = por %p120, %p121
      %p123 = scmp.ne.s32.totalorder %s114, %s115
      %p124 = scmp.eq.s32.totalorder %s20, 0
      %p125 = por %p123, %p124
      %p126 = scmp.ne.s32.totalorder %s114, %s115
      %p127 = scmp.eq.s32.totalorder %s21, 1
      %p128 = por %p126, %p127
      %p130 = scmp.ne.s32.totalorder %s115, %s129
      %p131 = scmp.eq.s32.totalorder %s21, 0
      %p132 = por %p130, %p131
      %s134 = sadd.s32 %s133, 1
      %p137 = scmp.eq.s32.totalorder %s15, 1
      %p138 = scmp.ne.s32.totalorder %s133, %s135
      %p139 = scmp.eq.s32.totalorder %s15, 0
      %p140 = por %p138, %p139
      %p141 = scmp.ne.s32.totalorder %s133, %s135
      %p142 = scmp.eq.s32.totalorder %s20, 1
      %p143 = por %p141, %p142
      %p144 = scmp.ne.s32.totalorder %s135, %s136
      %p145 = scmp.eq.s32.totalorder %s20, 0
      %p146 = por %p144, %p145
      %p147 = scmp.ne.s32.totalorder %s135, %s136
      %p148 = scmp.eq.s32.totalorder %s21, 1
      %p149 = por %p147, %p148
      %p151 = scmp.ne.s32.totalorder %s136, %s150
      %p152 = scmp.eq.s32.totalorder %s21, 0
      %p153 = por %p151, %p152
      %s154 = ssub.s32 %s15, %s22
      %p155 = scmp.eq.s32.totalorder %s154, 0
      %s157 = sadd.s32 %s156, 1
      %s158 = scalar_select %p155, %s156, %s157
      %p161 = pneg %p155
      %p162 = scmp.eq.s32.totalorder %s15, 1
      %p163 = por %p161, %p162
      %p164 = scmp.ne.s32.totalorder %s156, %s159
      %p165 = scmp.eq.s32.totalorder %s15, 0
      %p166 = por %p164, %p165
      %p167 = scmp.ne.s32.totalorder %s156, %s159
      %p168 = scmp.eq.s32.totalorder %s20, 1
      %p169 = por %p167, %p168
      %p170 = scmp.ne.s32.totalorder %s159, %s160
      %p171 = scmp.eq.s32.totalorder %s20, 0
      %p172 = por %p170, %p171
      %p173 = scmp.ne.s32.totalorder %s159, %s160
      %p174 = scmp.eq.s32.totalorder %s21, 1
      %p175 = por %p173, %p174
      %p177 = scmp.ne.s32.totalorder %s160, %s176
      %p178 = scmp.eq.s32.totalorder %s21, 0
      %p179 = por %p177, %p178
      %p180 = scmp.le.s32.totalorder 1, %s15
      %p181 = scmp.lt.s32.totalorder %s15, 3
      %p182 = pnand %p180, %p181
      %p183 = pneg %p182
      // Predicated region
      $region9: #{tpu_custom_call.1} parent=5 // pred_check
        _
      $region10: #{tpu_custom_call.1} parent=5 // pred_check_branch
        %185 = sbr.rel (%p182) target = $region12
      $region11: #{tpu_custom_call.1} parent=5 // pred_region
        %s186 = ssub.s32 %s15, 1
        // Predicated region
        $region13: #{tpu_custom_call.1} parent=11 // pred_check
          %p187 = pneg %p62
        $region14: #{tpu_custom_call.1} parent=11 // pred_check_branch
          %189 = sbr.rel (%p187) target = $region16
        $region15: #{tpu_custom_call.1} parent=11 // pred_region
          _
        $region16: #{tpu_custom_call.1} parent=11 // pred_fallthru
          _
        // Predicated region
        $region17: #{tpu_custom_call.1} parent=11 // pred_check
          %p190 = pneg %p83
        $region18: #{tpu_custom_call.1} parent=11 // pred_check_branch
          %192 = sbr.rel (%p190) target = $region20
        $region19: #{tpu_custom_call.1} parent=11 // pred_region
          _
        $region20: #{tpu_custom_call.1} parent=11 // pred_fallthru
          _
        // Predicated region
        $region21: #{tpu_custom_call.1} parent=11 // pred_check
          %p193 = pneg %p104
        $region22: #{tpu_custom_call.1} parent=11 // pred_check_branch
          %195 = sbr.rel (%p193) target = $region24
        $region23: #{tpu_custom_call.1} parent=11 // pred_region
          _
        $region24: #{tpu_custom_call.1} parent=11 // pred_fallthru
          _
        // Predicated region
        $region25: #{tpu_custom_call.1} parent=11 // pred_check
          %p196 = pneg %p125
        $region26: #{tpu_custom_call.1} parent=11 // pred_check_branch
          %198 = sbr.rel (%p196) target = $region28
        $region27: #{tpu_custom_call.1} parent=11 // pred_region
          _
        $region28: #{tpu_custom_call.1} parent=11 // pred_fallthru
          _
        // Predicated region
        $region29: #{tpu_custom_call.1} parent=11 // pred_check
          %p199 = pneg %p146
        $region30: #{tpu_custom_call.1} parent=11 // pred_check_branch
          %201 = sbr.rel (%p199) target = $region32
        $region31: #{tpu_custom_call.1} parent=11 // pred_region
          _
        $region32: #{tpu_custom_call.1} parent=11 // pred_fallthru
          _
      $region12: #{tpu_custom_call.1} parent=5 // pred_fallthru
        _
      %p202 = scmp.lt.s32.totalorder %s15, 2
      // Predicated region
      $region33: #{tpu_custom_call.1} parent=5 // pred_check
        %p203 = pneg %p202
      $region34: #{tpu_custom_call.1} parent=5 // pred_check_branch
        %205 = sbr.rel (%p203) target = $region36
      $region35: #{tpu_custom_call.1} parent=5 // pred_region
        // Predicated region
        $region37: #{tpu_custom_call.1} parent=35 // pred_check
          %p206 = pneg %p35
        $region38: #{tpu_custom_call.1} parent=35 // pred_check_branch
          %208 = sbr.rel (%p206) target = $region40
        $region39: #{tpu_custom_call.1} parent=35 // pred_region
          %p209 = scmp.lt.s32.totalorder %s15, 1
          %s210 = scalar_select %p209, %s15, 1
          %s211 = smul.addr %s210, 4
          %s212 = smul.addr %s211, 8
          %s213 = scalar_lea.vmem %s0, %s212
        $region40: #{tpu_custom_call.1} parent=35 // pred_fallthru
          _
      $region36: #{tpu_custom_call.1} parent=5 // pred_fallthru
        _
      %p214 = scmp.le.s32.totalorder 1, %s15
      %p215 = scmp.lt.s32.totalorder %s15, 3
      %p216 = pnand %p214, %p215
      %p217 = pneg %p216
      // Predicated region
      $region41: #{tpu_custom_call.1} parent=5 // pred_check
        _
      $region42: #{tpu_custom_call.1} parent=5 // pred_check_branch
        %219 = sbr.rel (%p216) target = $region44
      $region43: #{tpu_custom_call.1} parent=5 // pred_region
        %s220 = ssub.s32 %s15, 1
        %p221 = scmp.lt.s32.totalorder %s20, 1
        %s222 = scalar_select %p221, %s20, 1
        %s223 = smul.addr %s222, 4
        %s224 = smul.addr %s223, 8
        %s225 = scalar_lea.vmem %s0, %s224
        %p226 = pneg %p41
        %p227 = pneg %p38
        %p228 = pneg %p62
        %p229 = pneg %p59
        %p230 = pneg %p83
        %p231 = pneg %p80
        %p232 = pneg %p104
        %p233 = pneg %p101
        %p234 = pneg %p125
        %p235 = pneg %p122
        %p236 = pneg %p146
        %p237 = pneg %p143
        %p238 = pneg %p172
        %p239 = pneg %p169
        %s240 = sand.u32 %s159, 1
        %s241 = scalar_lea.sflag [#allocation3], %s240
        %s242 = sand.u32 %s159, 1
        %s243 = smul.addr %s242, 4
        %s244 = scalar_lea.vmem [#allocation2], %s243
        %p245 = scmp.lt.s32.totalorder %s20, 1
        %s246 = scalar_select %p245, %s20, 1
        %s247 = smul.addr %s246, 4
        %s248 = smul.addr %s247, 8
        %s249 = scalar_lea.vmem %s0, %s248
        %v250 = vld [vmem:[%s249] sm:$0xff]
        %v251 = vld [vmem:[%s249 + $0x8] sm:$0xff]
        %v252 = vld [vmem:[%s249 + $0x10] sm:$0xff]
        %v253 = vld [vmem:[%s249 + $0x18] sm:$0xff]
        %v254 = vld [vmem:[%s1] sm:$0xff]
        %v255 = vld [vmem:[%s1 + $0x8] sm:$0xff]
        %v256 = vld [vmem:[%s1 + $0x10] sm:$0xff]
        %v257 = vld [vmem:[%s1 + $0x18] sm:$0xff]
        %v258 = vld [vmem:[%s1 + $0x20] sm:$0xff]
        %v259 = vld [vmem:[%s1 + $0x28] sm:$0xff]
        %v260 = vld [vmem:[%s1 + $0x30] sm:$0xff]
        %v261 = vld [vmem:[%s1 + $0x38] sm:$0xff]
        %v262 = vld [vmem:[%s1 + $0x40] sm:$0xff]
        %vm263 = vcmask 130048
        %v265 = vsel %vm263, %v254, 0
        %v268 = vsel %vm263, %v255, 0
        %v271 = vsel %vm263, %v256, 0
        %v274 = vsel %vm263, %v257, 0
        %v277 = vsel %vm263, %v258, 0
        %v280 = vsel %vm263, %v259, 0
        %v283 = vsel %vm263, %v260, 0
        %v286 = vsel %vm263, %v261, 0
        %v289 = vsel %vm263, %v262, 0
        %291 = vmatprep.subr.mxu0 0.0
        %292 = vmatpush1.msra.mxu0 0.0
        %293 = vmatprep.subr.mxu0 0.0
        %294 = vmatpush1.msra.mxu0 0.0
        %295 = vmatprep.subr.mxu0 0.0
        %296 = vmatpush1.msra.mxu0 0.0
        %297 = vmatprep.subr.mxu0 0.0
        %298 = vmatpush1.msra.mxu0 0.0
        %299 = vmatprep.subr.mxu0 0.0
        %300 = vmatpush1.msra.mxu0 0.0
        %301 = vmatprep.subr.mxu0 0.0
        %302 = vmatpush1.msra.mxu0 0.0
        %303 = vmatprep.subr.mxu0 0.0
        %304 = vmatpush1.msra.mxu0 0.0
        %305 = vmatprep.subr.mxu0 0.0
        %306 = vmatpush1.msra.mxu0 0.0
        %307 = vmatprep.subr.mxu0 0.0
        %308 = vmatpush1.msra.mxu0 0.0
        %309 = vmatprep.subr.mxu0 0.0
        %310 = vmatpush1.msra.mxu0 0.0
        %311 = vmatprep.subr.mxu0 0.0
        %312 = vmatpush1.msra.mxu0 0.0
        %313 = vmatprep.subr.mxu0 0.0
        %314 = vmatpush1.msra.mxu0 0.0
        %315 = vmatprep.subr.mxu0 0.0
        %316 = vmatpush1.msra.mxu0 0.0
        %317 = vmatprep.subr.mxu0 0.0
        %318 = vmatpush1.msra.mxu0 0.0
        %319 = vmatprep.subr.mxu0 %v253
        %320 = vmatpush1.msra.mxu0 %v252
        %321 = vmatprep.subr.mxu0 %v251
        %322 = vmatpush1.msra.mxu0 %v250
        %323 = vmatprep.subr.mxu0 0.0
        %324 = vmatpush2.msra.mxu0 0.0
        %325 = vmatprep.subr.mxu0 0.0
        %326 = vmatpush2.msra.mxu0 0.0
        %327 = vmatprep.subr.mxu0 0.0
        %328 = vmatpush2.msra.mxu0 0.0
        %329 = vmatprep.subr.mxu0 0.0
        %330 = vmatpush2.msra.mxu0 0.0
        %331 = vmatprep.subr.mxu0 0.0
        %332 = vmatpush2.msra.mxu0 0.0
        %333 = vmatprep.subr.mxu0 0.0
        %334 = vmatpush2.msra.mxu0 0.0
        %335 = vmatprep.subr.mxu0 0.0
        %336 = vmatpush2.msra.mxu0 0.0
        %337 = vmatprep.subr.mxu0 0.0
        %338 = vmatpush2.msra.mxu0 0.0
        %339 = vmatprep.subr.mxu0 0.0
        %340 = vmatpush2.msra.mxu0 0.0
        %341 = vmatprep.subr.mxu0 0.0
        %342 = vmatpush2.msra.mxu0 0.0
        %343 = vmatprep.subr.mxu0 0.0
        %344 = vmatpush2.msra.mxu0 0.0
        %345 = vmatprep.subr.mxu0 0.0
        %346 = vmatpush2.msra.mxu0 0.0
        %347 = vmatprep.subr.mxu0 0.0
        %348 = vmatpush2.msra.mxu0 0.0
        %349 = vmatprep.subr.mxu0 0.0
        %350 = vmatpush2.msra.mxu0 0.0
        %351 = vmatprep.subr.mxu0 0.0
        %352 = vmatpush2.msra.mxu0 0.0
        %353 = vmatprep.subr.mxu0 0.0
        %354 = vmatpush2.msra.mxu0 0.0
        %355 = vmatprep.mubr.f32.mxu0 0.0
        %356 = vmatmul.mubr.f32.gmra.mxu0 %v265
        %v357 = vpop.f32.mrf.mxu0
        %v358 = vadd.f32 0.0, %v357
        %v359 = vpop.f32.mrf.mxu0
        %v360 = vadd.f32 0.0, %v359
        %361 = vmatprep.mubr.f32.mxu0 0.0
        %362 = vmatmul.mubr.f32.gmra.mxu0 %v268
        %v363 = vpop.f32.mrf.mxu0
        %v364 = vadd.f32 0.0, %v363
        %v365 = vpop.f32.mrf.mxu0
        %v366 = vadd.f32 0.0, %v365
        %367 = vmatprep.mubr.f32.mxu0 0.0
        %368 = vmatmul.mubr.f32.gmra.mxu0 %v271
        %v369 = vpop.f32.mrf.mxu0
        %v370 = vadd.f32 0.0, %v369
        %v371 = vpop.f32.mrf.mxu0
        %v372 = vadd.f32 0.0, %v371
        %373 = vmatprep.mubr.f32.mxu0 0.0
        %374 = vmatmul.mubr.f32.gmra.mxu0 %v274
        %v375 = vpop.f32.mrf.mxu0
        %v376 = vadd.f32 0.0, %v375
        %v377 = vpop.f32.mrf.mxu0
        %v378 = vadd.f32 0.0, %v377
        %379 = vmatprep.mubr.f32.mxu0 0.0
        %380 = vmatmul.mubr.f32.gmra.mxu0 %v277
        %v381 = vpop.f32.mrf.mxu0
        %v382 = vadd.f32 0.0, %v381
        %v383 = vpop.f32.mrf.mxu0
        %v384 = vadd.f32 0.0, %v383
        %385 = vmatprep.mubr.f32.mxu0 0.0
        %386 = vmatmul.mubr.f32.gmra.mxu0 %v280
        %v387 = vpop.f32.mrf.mxu0
        %v388 = vadd.f32 0.0, %v387
        %v389 = vpop.f32.mrf.mxu0
        %v390 = vadd.f32 0.0, %v389
        %391 = vmatprep.mubr.f32.mxu0 0.0
        %392 = vmatmul.mubr.f32.gmra.mxu0 %v283
        %v393 = vpop.f32.mrf.mxu0
        %v394 = vadd.f32 0.0, %v393
        %v395 = vpop.f32.mrf.mxu0
        %v396 = vadd.f32 0.0, %v395
        %397 = vmatprep.mubr.f32.mxu0 0.0
        %398 = vmatmul.mubr.f32.gmra.mxu0 %v286
        %v399 = vpop.f32.mrf.mxu0
        %v400 = vadd.f32 0.0, %v399
        %v401 = vpop.f32.mrf.mxu0
        %v402 = vadd.f32 0.0, %v401
        %403 = vmatprep.mubr.f32.mxu0 0.0
        %404 = vmatmul.mubr.f32.gmra.mxu0 %v289
        %v405 = vpop.f32.mrf.mxu0
        %v406 = vadd.f32 0.0, %v405
        %v407 = vpop.f32.mrf.mxu0
        %v408 = vadd.f32 0.0, %v407
        %409 = vdwg.mxu0
        %v410 = vld [vmem:[%s3] sm:$0x3]
        %411 = vrot.lane.b32.xlu0 %v358, 17
        %v412 = vpop.permute.xlu0 %411
        %413 = vrot.lane.b32.xlu0 %v360, 17
        %v414 = vpop.permute.xlu0 %413
        %v415 = vlaneseq
        %v416 = vand.u32 %v415, 127
        %vm417 = vcmp.lt.s32.totalorder %v416, 17
        %v418 = vsel %vm417, %v412, %v414
        %v419 = vsel %vm417, %v414, %v412
        %v421 = vlaneseq
        %v422 = vshrl.u32 %v421, 7
        %v423 = vsub.s32 0, %v422
        %v424 = vrot.slane %v410, %v423
        %v425 = vlaneseq
        %v426 = vshrl.u32 %v425, 7
        %v427 = vsub.s32 1, %v426
        %v428 = vrot.slane %v410, %v427
        %v431 = vmul.f32 %v424, %v419
        %v432 = vmul.f32 %v428, %v418
        %v433 = vadd.f32 %v382, %v431
        %v434 = vadd.f32 %v384, %v432
        %s435 = scalar_lea.vmem %s3, 2
        %v436 = vld [vmem:[%s435] sm:$0x3]
        %437 = vrot.lane.b32.xlu0 %v364, 16
        %v438 = vpop.permute.xlu0 %437
        %439 = vrot.lane.b32.xlu0 %v366, 16
        %v440 = vpop.permute.xlu0 %439
        %vm441 = vcmp.lt.s32.totalorder %v416, 16
        %v442 = vsel %vm441, %v438, %v440
        %v443 = vsel %vm441, %v440, %v438
        %v445 = vlaneseq
        %v446 = vshrl.u32 %v445, 7
        %v447 = vsub.s32 0, %v446
        %v448 = vrot.slane %v436, %v447
        %v449 = vlaneseq
        %v450 = vshrl.u32 %v449, 7
        %v451 = vsub.s32 1, %v450
        %v452 = vrot.slane %v436, %v451
        %v455 = vmul.f32 %v448, %v443
        %v456 = vmul.f32 %v452, %v442
        %v457 = vadd.f32 %v433, %v455
        %v458 = vadd.f32 %v434, %v456
        %s459 = scalar_lea.vmem %s3, 4
        %v460 = vld [vmem:[%s459] sm:$0x3]
        %461 = vrot.lane.b32.xlu0 %v370, 15
        %v462 = vpop.permute.xlu0 %461
        %463 = vrot.lane.b32.xlu0 %v372, 15
        %v464 = vpop.permute.xlu0 %463
        %vm465 = vcmp.lt.s32.totalorder %v416, 15
        %v466 = vsel %vm465, %v462, %v464
        %v467 = vsel %vm465, %v464, %v462
        %v469 = vlaneseq
        %v470 = vshrl.u32 %v469, 7
        %v471 = vsub.s32 0, %v470
        %v472 = vrot.slane %v460, %v471
        %v473 = vlaneseq
        %v474 = vshrl.u32 %v473, 7
        %v475 = vsub.s32 1, %v474
        %v476 = vrot.slane %v460, %v475
        %v479 = vmul.f32 %v472, %v467
        %v480 = vmul.f32 %v476, %v466
        %v481 = vadd.f32 %v457, %v479
        %v482 = vadd.f32 %v458, %v480
        %s483 = scalar_lea.vmem %s3, 6
        %v484 = vld [vmem:[%s483] sm:$0x3]
        %485 = vrot.lane.b32.xlu0 %v376, 1
        %v486 = vpop.permute.xlu0 %485
        %487 = vrot.lane.b32.xlu0 %v378, 1
        %v488 = vpop.permute.xlu0 %487
        %vm489 = vcmp.lt.s32.totalorder %v416, 1
        %v490 = vsel %vm489, %v486, %v488
        %v491 = vsel %vm489, %v488, %v486
        %v493 = vlaneseq
        %v494 = vshrl.u32 %v493, 7
        %v495 = vsub.s32 0, %v494
        %v496 = vrot.slane %v484, %v495
        %v497 = vlaneseq
        %v498 = vshrl.u32 %v497, 7
        %v499 = vsub.s32 1, %v498
        %v500 = vrot.slane %v484, %v499
        %v503 = vmul.f32 %v496, %v491
        %v504 = vmul.f32 %v500, %v490
        %v505 = vadd.f32 %v481, %v503
        %v506 = vadd.f32 %v482, %v504
        %s507 = scalar_lea.vmem %s3, 10
        %v508 = vld [vmem:[%s507] sm:$0x3]
        %509 = vrot.lane.b32.xlu0 %v388, 127
        %v510 = vpop.permute.xlu0 %509
        %511 = vrot.lane.b32.xlu0 %v390, 127
        %v512 = vpop.permute.xlu0 %511
        %vm513 = vcmp.lt.s32.totalorder %v416, 127
        %v514 = vsel %vm513, %v510, %v512
        %v515 = vsel %vm513, %v512, %v510
        %v517 = vlaneseq
        %v518 = vshrl.u32 %v517, 7
        %v519 = vsub.s32 0, %v518
        %v520 = vrot.slane %v508, %v519
        %v521 = vlaneseq
        %v522 = vshrl.u32 %v521, 7
        %v523 = vsub.s32 1, %v522
        %v524 = vrot.slane %v508, %v523
        %v527 = vmul.f32 %v520, %v514
        %v528 = vmul.f32 %v524, %v515
        %v529 = vadd.f32 %v505, %v527
        %v530 = vadd.f32 %v506, %v528
        %s531 = scalar_lea.vmem %s3, 12
        %v532 = vld [vmem:[%s531] sm:$0x3]
        %533 = vrot.lane.b32.xlu0 %v394, 113
        %v534 = vpop.permute.xlu0 %533
        %535 = vrot.lane.b32.xlu0 %v396, 113
        %v536 = vpop.permute.xlu0 %535
        %vm537 = vcmp.lt.s32.totalorder %v416, 113
        %v538 = vsel %vm537, %v534, %v536
        %v539 = vsel %vm537, %v536, %v534
        %v541 = vlaneseq
        %v542 = vshrl.u32 %v541, 7
        %v543 = vsub.s32 0, %v542
        %v544 = vrot.slane %v532, %v543
        %v545 = vlaneseq
        %v546 = vshrl.u32 %v545, 7
        %v547 = vsub.s32 1, %v546
        %v548 = vrot.slane %v532, %v547
        %v551 = vmul.f32 %v544, %v538
        %v552 = vmul.f32 %v548, %v539
        %v553 = vadd.f32 %v529, %v551
        %v554 = vadd.f32 %v530, %v552
        %s555 = scalar_lea.vmem %s3, 14
        %v556 = vld [vmem:[%s555] sm:$0x3]
        %557 = vrot.lane.b32.xlu0 %v400, 112
        %v558 = vpop.permute.xlu0 %557
        %559 = vrot.lane.b32.xlu0 %v402, 112
        %v560 = vpop.permute.xlu0 %559
        %vm561 = vcmp.lt.s32.totalorder %v416, 112
        %v562 = vsel %vm561, %v558, %v560
        %v563 = vsel %vm561, %v560, %v558
        %v565 = vlaneseq
        %v566 = vshrl.u32 %v565, 7
        %v567 = vsub.s32 0, %v566
        %v568 = vrot.slane %v556, %v567
        %v569 = vlaneseq
        %v570 = vshrl.u32 %v569, 7
        %v571 = vsub.s32 1, %v570
        %v572 = vrot.slane %v556, %v571
        %v575 = vmul.f32 %v568, %v562
        %v576 = vmul.f32 %v572, %v563
        %v577 = vadd.f32 %v553, %v575
        %v578 = vadd.f32 %v554, %v576
        %s579 = scalar_lea.vmem %s3, 16
        %v580 = vld [vmem:[%s579] sm:$0x3]
        %581 = vrot.lane.b32.xlu0 %v406, 111
        %v582 = vpop.permute.xlu0 %581
        %583 = vrot.lane.b32.xlu0 %v408, 111
        %v584 = vpop.permute.xlu0 %583
        %vm585 = vcmp.lt.s32.totalorder %v416, 111
        %v586 = vsel %vm585, %v582, %v584
        %v587 = vsel %vm585, %v584, %v582
        %v589 = vlaneseq
        %v590 = vshrl.u32 %v589, 7
        %v591 = vsub.s32 0, %v590
        %v592 = vrot.slane %v580, %v591
        %v593 = vlaneseq
        %v594 = vshrl.u32 %v593, 7
        %v595 = vsub.s32 1, %v594
        %v596 = vrot.slane %v580, %v595
        %v599 = vmul.f32 %v592, %v586
        %v600 = vmul.f32 %v596, %v587
        %v601 = vadd.f32 %v577, %v599
        %v602 = vadd.f32 %v578, %v600
        %v603 = vld [vmem:[%s2] sm:$0xff]
        %605 = vset.pattern.permute.xlu0 0
        %606 = vperm.xlu0 %605, %v603
        %v607 = vpop.permute.xlu0 %606
        %v609 = vadd.f32 %v601, %v607
        %v610 = vadd.f32 %v602, %v607
        %v611 = vmax.f32 %v609, 0.0
        %v612 = vmax.f32 %v610, 0.0
        %v613 = vld [vmem:[%s4] sm:$0x3]
        %v614 = vld [vmem:[%s5] sm:$0x3]
        %616 = vset.pattern.permute.xlu0 0
        %617 = vperm.xlu0 %616, %v614
        %v618 = vpop.permute.xlu0 %617
        %vm620 = vcmask 64512
        %v622 = vsel %vm620, %v613, 0
        %624 = vmatprep.subr.mxu0 0.0
        %625 = vmatpush1.msra.mxu0 0.0
        %626 = vmatprep.subr.mxu0 0.0
        %627 = vmatpush1.msra.mxu0 0.0
        %628 = vmatprep.subr.mxu0 0.0
        %629 = vmatpush1.msra.mxu0 0.0
        %630 = vmatprep.subr.mxu0 0.0
        %631 = vmatpush1.msra.mxu0 0.0
        %632 = vmatprep.subr.mxu0 0.0
        %633 = vmatpush1.msra.mxu0 0.0
        %634 = vmatprep.subr.mxu0 0.0
        %635 = vmatpush1.msra.mxu0 0.0
        %636 = vmatprep.subr.mxu0 0.0
        %637 = vmatpush1.msra.mxu0 0.0
        %638 = vmatprep.subr.mxu0 0.0
        %639 = vmatpush1.msra.mxu0 0.0
        %640 = vmatprep.subr.mxu0 0.0
        %641 = vmatpush1.msra.mxu0 0.0
        %642 = vmatprep.subr.mxu0 0.0
        %643 = vmatpush1.msra.mxu0 0.0
        %644 = vmatprep.subr.mxu0 0.0
        %645 = vmatpush1.msra.mxu0 0.0
        %646 = vmatprep.subr.mxu0 0.0
        %647 = vmatpush1.msra.mxu0 0.0
        %648 = vmatprep.subr.mxu0 0.0
        %649 = vmatpush1.msra.mxu0 0.0
        %650 = vmatprep.subr.mxu0 0.0
        %651 = vmatpush1.msra.mxu0 0.0
        %652 = vmatprep.subr.mxu0 0.0
        %653 = vmatpush1.msra.mxu0 0.0
        %654 = vmatprep.subr.mxu0 %v612
        %655 = vmatpush1.msra.mxu0 %v611
        %656 = vmatprep.subr.mxu0 0.0
        %657 = vmatpush2.msra.mxu0 0.0
        %658 = vmatprep.subr.mxu0 0.0
        %659 = vmatpush2.msra.mxu0 0.0
        %660 = vmatprep.subr.mxu0 0.0
        %661 = vmatpush2.msra.mxu0 0.0
        %662 = vmatprep.subr.mxu0 0.0
        %663 = vmatpush2.msra.mxu0 0.0
        %664 = vmatprep.subr.mxu0 0.0
        %665 = vmatpush2.msra.mxu0 0.0
        %666 = vmatprep.subr.mxu0 0.0
        %667 = vmatpush2.msra.mxu0 0.0
        %668 = vmatprep.subr.mxu0 0.0
        %669 = vmatpush2.msra.mxu0 0.0
        %670 = vmatprep.subr.mxu0 0.0
        %671 = vmatpush2.msra.mxu0 0.0
        %672 = vmatprep.subr.mxu0 0.0
        %673 = vmatpush2.msra.mxu0 0.0
        %674 = vmatprep.subr.mxu0 0.0
        %675 = vmatpush2.msra.mxu0 0.0
        %676 = vmatprep.subr.mxu0 0.0
        %677 = vmatpush2.msra.mxu0 0.0
        %678 = vmatprep.subr.mxu0 0.0
        %679 = vmatpush2.msra.mxu0 0.0
        %680 = vmatprep.subr.mxu0 0.0
        %681 = vmatpush2.msra.mxu0 0.0
        %682 = vmatprep.subr.mxu0 0.0
        %683 = vmatpush2.msra.mxu0 0.0
        %684 = vmatprep.subr.mxu0 0.0
        %685 = vmatpush2.msra.mxu0 0.0
        %686 = vmatprep.subr.mxu0 0.0
        %687 = vmatpush2.msra.mxu0 0.0
        %688 = vmatprep.mubr.f32.mxu0 0.0
        %689 = vmatmul.mubr.f32.gmra.mxu0 %v622
        %v690 = vpop.f32.mrf.mxu0
        %v691 = vadd.f32 %v618, %v690
        %v692 = vpop.f32.mrf.mxu0
        %v693 = vadd.f32 %v618, %v692
        %694 = vdwg.mxu0
        %v697 = vcombine.low %v691, %v693
        %v699 = vunpack.c.l.s4 1983009808
        %v700 = vunpack.c.0.s8 %v699
        %v701 = vlaneseq
        %v702 = vshrl.u32 %v701, 7
        %v703 = vsub.s32 %v700, %v702
        %v704 = vrot.slane %v697, %v703
        %706 = vst [vmem:[%s244] sm:$0xf] %v704
        %s707 = sand.u32 %s159, 1
        %s708 = scalar_lea.sflag [#allocation3], %s707
        %s709 = sand.u32 %s159, 1
        %s710 = smul.addr %s709, 4
        %s711 = scalar_lea.vmem [#allocation2], %s710
        // Predicated region
        $region45: #{tpu_custom_call.1} parent=43 // pred_check
          %p712 = pneg %p169
        $region46: #{tpu_custom_call.1} parent=43 // pred_check_branch
          %714 = sbr.rel (%p712) target = $region48
        $region47: #{tpu_custom_call.1} parent=43 // pred_region
          %s716 = ssub.s32 64, 64
          %717 = vsyncadd %s708, %s716
          %s718 = smul.addr %s20, 2
          %s719 = smul.addr %s718, 32
          %s720 = scalar_lea.hbm %s6, %s719
          %s722 = sshll.u32 %s711, 4
          %s723 = int_to_ptr.vmem [resolvable:$true] %s722
          %725 = dma.vmem_to_hbm [thread:$0]  %s723, 64, %s720, %s708
        $region48: #{tpu_custom_call.1} parent=43 // pred_fallthru
          _
      $region44: #{tpu_custom_call.1} parent=5 // pred_fallthru
        _
      %p726 = scmp.le.s32.totalorder 2, %s15
      // Predicated region
      $region49: #{tpu_custom_call.1} parent=5 // pred_check
        %p727 = pneg %p726
      $region50: #{tpu_custom_call.1} parent=5 // pred_check_branch
        %729 = sbr.rel (%p727) target = $region52
      $region51: #{tpu_custom_call.1} parent=5 // pred_region
        %s730 = ssub.s32 %s15, 2
        // Predicated region
        $region53: #{tpu_custom_call.1} parent=51 // pred_check
          %p731 = pneg %p175
        $region54: #{tpu_custom_call.1} parent=51 // pred_check_branch
          %733 = sbr.rel (%p731) target = $region56
        $region55: #{tpu_custom_call.1} parent=51 // pred_region
          %s734 = sand.u32 %s160, 1
          %s735 = scalar_lea.sflag [#allocation3], %s734
          %s736 = sand.u32 %s160, 1
          %s737 = smul.addr %s736, 4
          %s738 = scalar_lea.vmem [#allocation2], %s737
          %739 = dma.done %s735, 64
        $region56: #{tpu_custom_call.1} parent=51 // pred_fallthru
          _
      $region52: #{tpu_custom_call.1} parent=5 // pred_fallthru
        _
    $region6: #{tpu_custom_call.1} parent=1 // loop_footer
      %s19 = sadd.s32 1, %s15
    $region7: #{tpu_custom_call.1} parent=1 // loop_footer_branch
      %14 = sbr.rel target = $region3
    $region8: #{tpu_custom_call.1} parent=1 // loop_exit
      _
    %740 = vsyncpa [#allocation3], 1
    %s741 = scalar_lea.sflag [#allocation3], 1
    %742 = vsyncpa %s741, 1

</llo_original>
